<compile_context>
chip_gen: v6e
topology: v6e:2x2x1
jax: 0.10.0
libtpu: 0.0.40
codegen_flags: <defaults>
</compile_context>

<pallas_src>
import jax
import jax.numpy as jnp
from jax.experimental import pallas as pl
from jax.experimental.pallas import tpu as pltpu


TARGET_STEPS = 8  # keep the DMA pipeline at least this deep when rows allow it
_LANE_CANDIDATES = (1024, 896, 768, 640, 512, 384, 256, 128)


def _a_kernel(x_ref, o_ref):
    x = x_ref[...]
    three = jnp.asarray(3, dtype=x.dtype)
    two = jnp.asarray(2, dtype=x.dtype)
    o_ref[...] = x * three + two


def _tile_budget():
    """(per-buffer tile bytes, vmem_limit_bytes), chip-aware with a safe fallback."""
    vmem = 0
    try:
        info = pltpu.get_tpu_info()
        vmem = int(getattr(info, "vmem_capacity_bytes", 0) or 0)
    except Exception:
        vmem = 0
    if vmem and vmem <= (96 << 20):
        # v7x-class core (64 MiB VMEM, ~3.2 TB/s/TC): bigger tiles amortize step overhead.
        return 8 << 20, 48 << 20
    # v5e / v6e (128 MiB physical VMEM) or unknown: 4 MiB tiles; explicit limit so the
    # 4 live double-buffered tiles never hit the default scoped-VMEM cap.
    return 4 << 20, 48 << 20


def _run_2d(x2d: jax.Array) -> jax.Array:
    """3*x + 2 over a lane-dense (rows, lanes) slab via a pipelined 1-D row grid."""
    rows, lanes = x2d.shape
    itemsize = jnp.dtype(x2d.dtype).itemsize
    sub = max(8, 32 // itemsize)  # sublane multiple: 8 (f32) / 16 (bf16) / 32 (int8)
    tile_bytes, vmem_limit = _tile_budget()

    if rows <= sub:
        tr = rows  # full-extent block (tiny input or ragged tail)
    else:
        # Cap rows/tile by the per-buffer byte budget; aim for >= TARGET_STEPS steps.
        cap = max(sub, (tile_bytes // (lanes * itemsize)) // sub * sub)
        tr = -(-rows // TARGET_STEPS)      # ceil(rows / TARGET_STEPS)
        tr = -(-tr // sub) * sub           # round up to the sublane multiple
        tr = min(tr, cap)
    grid = (pl.cdiv(rows, tr),)

    return pl.pallas_call(
        _a_kernel,
        out_shape=jax.ShapeDtypeStruct((rows, lanes), x2d.dtype),
        grid=grid,
        in_specs=[pl.BlockSpec((tr, lanes), lambda i: (i, 0))],
        out_specs=pl.BlockSpec((tr, lanes), lambda i: (i, 0)),
        compiler_params=pltpu.CompilerParams(
            dimension_semantics=("parallel",),
            vmem_limit_bytes=vmem_limit,
        ),
    )(x2d)


def module_a_forward(x: jax.Array) -> jax.Array:
    """Forward of module A: ((x * 3) + 1) + 1 == 3*x + 2, computed in Pallas."""
    n = int(x.size)
    if n == 0:
        return x
    x_flat = x.reshape(-1)  # no-op relayout for a contiguous array

    if n % 128 == 0:
        # Aligned: widest lane count (multiple of 128) that divides n -> no pad, no slice.
        lanes = next(c for c in _LANE_CANDIDATES if n % c == 0)
        return _run_2d(x_flat.reshape(n // lanes, lanes)).reshape(x.shape)

    # Ragged: kernel over the aligned bulk + one tiny full-extent tail block.
    lanes = 1024 if n >= 1024 else 128
    bulk = (n // lanes) * lanes
    pieces = []
    if bulk:
        pieces.append(_run_2d(x_flat[:bulk].reshape(bulk // lanes, lanes)).reshape(-1))
    pieces.append(_run_2d(x_flat[bulk:].reshape(1, n - bulk)).reshape(-1))
    out_flat = pieces[0] if len(pieces) == 1 else jnp.concatenate(pieces)
    return out_flat.reshape(x.shape)


if __name__ == "__main__":
    key = jax.random.PRNGKey(0)
    k1, k2, k3 = jax.random.split(key, 3)

    # Small NCHW tensor (lane-aligned element count: 2*4*16*16 = 2048).
    x = jax.random.normal(k1, (2, 4, 16, 16), dtype=jnp.float32)
    y = jax.block_until_ready(module_a_forward(x))
    assert jnp.allclose(y, (x * 3 + 1) + 1, atol=1e-6), "mismatch (aligned shape)"

    # Ragged element count (3*5*7*11 = 1155) -> bulk kernel + tail block, no pad/slice.
    x2 = jax.random.normal(k2, (3, 5, 7, 11), dtype=jnp.float32)
    y2 = jax.block_until_ready(module_a_forward(x2))
    assert jnp.allclose(y2, (x2 * 3 + 1) + 1, atol=1e-6), "mismatch (ragged shape)"

    # bf16 + multi-step grid with a partial last row-block (rows=72, tr=16).
    x3 = jax.random.normal(k3, (9, 8, 1024), dtype=jnp.bfloat16)
    y3 = jax.block_until_ready(module_a_forward(x3))
    ref3 = ((x3 * 3) + 1) + 1
    assert jnp.allclose(y3.astype(jnp.float32), ref3.astype(jnp.float32), atol=0.25), \
        "mismatch (bf16 tiled shape)"

    print("KERNEL_OK")
</pallas_src>

<mosaic_0001>
module attributes {stable_mosaic.version = 11 : i64} {
  func.func @_a_kernel(%arg0: i32, %arg1: memref<2x1024xf32, #tpu.memory_space<vmem>>, %arg2: memref<2x1024xf32, #tpu.memory_space<vmem>>) attributes {dimension_semantics = [#tpu.dimension_semantics<parallel>], iteration_bounds = array<i64: 1>, scalar_prefetch = 0 : i64, scratch_operands = 0 : i64, tpu.core_type = #tpu.core_type<tc>, window_params = [{transform_indices = @transform_0, window_bounds = array<i64: 2, 1024>}, {transform_indices = @transform_1, window_bounds = array<i64: 2, 1024>}]} {
    %c0 = arith.constant 0 : index
    %c0_0 = arith.constant 0 : index
    %0 = vector.load %arg1[%c0, %c0_0] : memref<2x1024xf32, #tpu.memory_space<vmem>>, vector<2x1024xf32>
    %cst = arith.constant 3.000000e+00 : f32
    %1 = vector.broadcast %cst : f32 to vector<2x1024xf32>
    %2 = arith.mulf %0, %1 : vector<2x1024xf32>
    %cst_1 = arith.constant 2.000000e+00 : f32
    %3 = vector.broadcast %cst_1 : f32 to vector<2x1024xf32>
    %4 = arith.addf %2, %3 : vector<2x1024xf32>
    %c0_2 = arith.constant 0 : index
    %c0_3 = arith.constant 0 : index
    %5 = vector.load %arg2[%c0_2, %c0_3] : memref<2x1024xf32, #tpu.memory_space<vmem>>, vector<2x1024xf32>
    tpu.vector_store %arg2[%c0_2, %c0_3], %4 {strides = array<i32>} : memref<2x1024xf32, #tpu.memory_space<vmem>>, vector<2x1024xf32>,
    return
  }
  func.func @transform_0(%arg0: i32) -> (i32, i32) {
    %c0_i32 = arith.constant 0 : i32
    %c0_i32_0 = arith.constant 0 : i32
    return %arg0, %c0_i32 : i32, i32
  }
  func.func @transform_1(%arg0: i32) -> (i32, i32) {
    %c0_i32 = arith.constant 0 : i32
    %c0_i32_0 = arith.constant 0 : i32
    return %arg0, %c0_i32 : i32, i32
  }
}

</mosaic_0001>

<llo_original>
// kernel: tpu_custom_call.1
$region0: #{tpu_custom_call.1}
  #allocation0 [shape = 'u32[]', space=smem, size = 0x4, offset = 0x4, fixed_abs, tag = 'smem constant byte address 0x4 - core index']
  #allocation1 [shape = 'u32[144,128]{1,0:T(1,128)}', space=vmem, size = 0x12000, scoped, tag = 'internal scratch']
  %s0 = inlined_call_operand.hbm [shape: f32[2,1024], index: 0, kind: input, shape index: {}]
  %s1 = inlined_call_operand.hbm [shape: f32[2,1024], index: 1, kind: output, shape index: {}]
  %s2 = sld [smem:[#allocation0]]
  $region18: #{tpu_custom_call.1} parent=0
    _
  %s4 = ssub.s32 1, %s2
  %s5 = scalar_select 0, %s4, %s2
  $region1: #{tpu_custom_call.1} parent=0
    #allocation2 [shape = 'u8[8192]{0}', space=vmem, size = 0x2000, scoped, tag = 'input window, operand 0, single buffered']
    #allocation3 [shape = 's32[1]{0}', space=sflag, size = 0x4, scoped, tag = 'scoped memory for tpu_custom_call.1']
    #allocation4 [shape = 's32[1]{0}', space=sflag, size = 0x4, scoped, tag = 'scoped memory for tpu_custom_call.1']
    #allocation5 [shape = 'u8[8192]{0}', space=vmem, size = 0x2000, scoped, tag = 'output window, operand 0, single buffered']
    %6 = vsyncpa [#allocation3], 0
    %7 = vsyncpa [#allocation4], 0
    // Predicated region
    $region2: #{tpu_custom_call.1} parent=1 // pred_check
      _
    $region3: #{tpu_custom_call.1} parent=1 // pred_check_branch
      %9 = sbr.rel (0) target = $region5
    $region4: #{tpu_custom_call.1} parent=1 // pred_region
      %s11 = ssub.s32 256, 256
      %12 = vsyncadd [#allocation3], %s11
      %s14 = sshll.u32 [#allocation2], 4
      %s15 = int_to_ptr.vmem [resolvable:$true] %s14
      %17 = dma.hbm_to_vmem [thread:$0]  %s0, 256, %s15, [#allocation3]
    $region5: #{tpu_custom_call.1} parent=1 // pred_fallthru
      _
    // Predicated region
    $region6: #{tpu_custom_call.1} parent=1 // pred_check
      _
    $region7: #{tpu_custom_call.1} parent=1 // pred_check_branch
      %19 = sbr.rel (0) target = $region9
    $region8: #{tpu_custom_call.1} parent=1 // pred_region
      %20 = dma.done [#allocation3], 256
    $region9: #{tpu_custom_call.1} parent=1 // pred_fallthru
      _
    %v21 = vld [vmem:[#allocation2] sm:$0xff]
    %v22 = vld [vmem:[#allocation2 + $0x8] sm:$0xff]
    %v23 = vmul.f32 %v21, 3.0
    %v24 = vmul.f32 %v22, 3.0
    %v25 = vadd.f32 %v23, 2.0
    %v26 = vadd.f32 %v24, 2.0
    %27 = vst [vmem:[#allocation5] sm:$0xff] %v25
    %28 = vst [vmem:[#allocation5 + $0x8] sm:$0xff] %v26
    // Predicated region
    $region10: #{tpu_custom_call.1} parent=1 // pred_check
      _
    $region11: #{tpu_custom_call.1} parent=1 // pred_check_branch
      %30 = sbr.rel (0) target = $region13
    $region12: #{tpu_custom_call.1} parent=1 // pred_region
      %s32 = ssub.s32 256, 256
      %33 = vsyncadd [#allocation4], %s32
      %s35 = sshll.u32 [#allocation5], 4
      %s36 = int_to_ptr.vmem [resolvable:$true] %s35
      %38 = dma.vmem_to_hbm [thread:$0]  %s36, 256, %s1, [#allocation4]
    $region13: #{tpu_custom_call.1} parent=1 // pred_fallthru
      _
    // Predicated region
    $region14: #{tpu_custom_call.1} parent=1 // pred_check
      _
    $region15: #{tpu_custom_call.1} parent=1 // pred_check_branch
      %40 = sbr.rel (0) target = $region17
    $region16: #{tpu_custom_call.1} parent=1 // pred_region
      %41 = dma.done [#allocation4], 256
    $region17: #{tpu_custom_call.1} parent=1 // pred_fallthru
      _
    %42 = vsyncpa [#allocation3], 1
    %43 = vsyncpa [#allocation4], 1

</llo_original>
